<compile_context>
chip_gen: v5e
topology: v5e:2x2
jax: 0.10.0
libtpu: 0.0.40
codegen_flags: <defaults>
</compile_context>

<pallas_src>
import functools
import math

import jax
import jax.numpy as jnp
from jax import lax
from jax.experimental import pallas as pl
from jax.experimental.pallas import tpu as pltpu


def _round_up(x, m):
    return ((x + m - 1) // m) * m


def _vmem_capacity_bytes():
    """Physical VMEM of the local TPU generation (conservative fallback)."""
    try:
        return int(pltpu.get_tpu_info().vmem_capacity_bytes)
    except Exception:
        return 64 * 1024 * 1024  # v7x-sized fallback: safe on every generation


def _est_vmem(tm, tn, tk, in_bytes, out_bytes):
    """Double-buffered inputs/outputs + resident fp32 accumulator."""
    return (2 * tm * tk * in_bytes        # x tile
            + 2 * tk * tn * in_bytes      # weight tile
            + 2 * tn * 4                  # bias row (fp32)
            + tm * tn * 4                 # fp32 accumulator (resident)
            + 2 * tm * tn * out_bytes)    # output tile


def _balanced(dim, t, align):
    """Shrink tile t so the blocks over `dim` are evenly sized (less padding)."""
    n = -(-dim // t)
    return _round_up(-(-dim // n), align)


def _select_tiles(M, N, K, in_bytes, out_bytes, m_align, vmem_cap,
                  split_n_for_small_m=True):
    """Generation-aware tile selection: big lane-dense tiles that fit VMEM."""
    budget = int(0.6 * vmem_cap)          # leave headroom for compiler scratch
    Mp = _round_up(M, m_align)
    Np = _round_up(N, 128)
    Kp = _round_up(K, 128)

    # Large defaults: tm~tn (arithmetic intensity), tk up to full K (fewer
    # accumulator read-modify-write passes + fewer grid steps).
    tm = min(Mp, 768)
    tn = min(Np, 768)
    tk = min(Kp, 2048)
    tm = _balanced(Mp, tm, m_align)
    tn = _balanced(Np, tn, 128)
    tk = _balanced(Kp, tk, 128)

    # Small-M shapes: keep >= 2 blocks along the parallel N axis so both
    # TensorCores (v7x megacore) have work instead of one huge tn block.
    if split_n_for_small_m and Mp <= tm and Np // tn <= 1 and Np >= 256:
        tn = _round_up(max(Np // 2, 128), 128)

    # Shrink until the double-buffered working set fits this generation's VMEM.
    while _est_vmem(tm, tn, tk, in_bytes, out_bytes) > budget:
        if tk >= max(tm, tn) and tk > 128:
            tk = _round_up(tk // 2, 128)
        elif tn >= tm and tn > 128:
            tn = _round_up(tn // 2, 128)
        elif tm > m_align:
            tm = _round_up(max(tm // 2, m_align), m_align)
        elif tk > 128:
            tk = _round_up(tk // 2, 128)
        elif tn > 128:
            tn = _round_up(tn // 2, 128)
        else:
            break

    tm = _balanced(Mp, tm, m_align)
    tn = _balanced(Np, tn, 128)
    tk = _balanced(Kp, tk, 128)
    return tm, tn, tk


def _fc_kernel(x_ref, w_ref, b_ref, o_ref, acc_ref, *, relu, n_k):
    """One (tm, tn) output tile; grid axis 2 reduces over K.

    x_ref: (tm, tk)  activations (bf16 by default)
    w_ref: (tk, tn)  weight, already transposed to (K, N) -> plain contraction
    b_ref: (1, tn)   fp32 bias row
    acc_ref: (tm, tn) fp32 VMEM accumulator (resident across the k axis)
    """
    k = pl.program_id(2)

    # Fold the bias into the accumulator init so the epilogue is ReLU+cast+store.
    @pl.when(k == 0)
    def _():
        acc_ref[...] = jnp.broadcast_to(
            b_ref[...].astype(jnp.float32), acc_ref.shape)

    acc_ref[...] += jnp.dot(x_ref[...], w_ref[...],
                            preferred_element_type=jnp.float32)

    @pl.when(k == n_k - 1)
    def _():
        out = acc_ref[...]
        if relu:
            out = jnp.maximum(out, 0.0)
        o_ref[...] = out.astype(o_ref.dtype)


def _fc_pallas_call(x, w_kn, b2d, *, relu, tm, tn, tk, out_dtype):
    """x: (Mp, Kp), w_kn: (Kp, Np), b2d: (1, Np) -- all padded to the tiles."""
    Mp, Kp = x.shape
    Kp2, Np = w_kn.shape
    assert Kp == Kp2
    n_k = Kp // tk
    grid = (Mp // tm, Np // tn, n_k)
    kernel = functools.partial(_fc_kernel, relu=relu, n_k=n_k)

    vmem_cap = _vmem_capacity_bytes()
    in_bytes = x.dtype.itemsize
    out_bytes = jnp.dtype(out_dtype).itemsize
    cost = pl.CostEstimate(
        flops=2 * Mp * Np * Kp,
        transcendentals=0,
        bytes_accessed=(Mp * Kp + Kp * Np) * in_bytes + Np * 4
                       + Mp * Np * out_bytes,
    )

    return pl.pallas_call(
        kernel,
        out_shape=jax.ShapeDtypeStruct((Mp, Np), out_dtype),
        grid_spec=pltpu.PrefetchScalarGridSpec(
            num_scalar_prefetch=0,
            grid=grid,
            in_specs=[
                pl.BlockSpec((tm, tk), lambda i, j, k: (i, k)),   # x
                pl.BlockSpec((tk, tn), lambda i, j, k: (k, j)),   # weight (K,N)
                pl.BlockSpec((1, tn), lambda i, j, k: (0, j)),    # bias row
            ],
            out_specs=pl.BlockSpec((tm, tn), lambda i, j, k: (i, j)),
            scratch_shapes=[pltpu.VMEM((tm, tn), jnp.float32)],
        ),
        compiler_params=pltpu.CompilerParams(
            dimension_semantics=("parallel", "parallel", "arbitrary"),
            # Generation-aware: never exceeds physical VMEM (v7x = 64 MiB).
            vmem_limit_bytes=int(0.85 * vmem_cap),
        ),
        cost_estimate=cost,
    )(x, w_kn, b2d)


def _m_align(itemsize):
    if itemsize >= 4:
        return 8
    if itemsize == 2:
        return 16
    return 32


def fc_forward(x, weight, bias, *, relu=True, compute_dtype=jnp.bfloat16,
               tm=None, tn=None, tk=None):
    """Drop-in forward: weight in PyTorch (N, K) layout; returns (M, N) in x.dtype.

    bf16 operands + fp32 accumulation by default; pass compute_dtype=None for
    a full-f32 path. For repeated calls with the same weights prefer `make_fc`
    (hoists the weight transpose/cast/pad out of the hot path).
    """
    M, K = x.shape
    N, K2 = weight.shape
    assert K == K2 and bias.shape == (N,)
    out_dtype = x.dtype

    w_kn = jnp.asarray(weight).T                    # (K, N): plain contraction
    if compute_dtype is not None:
        x = x.astype(compute_dtype)
        w_kn = w_kn.astype(compute_dtype)

    in_bytes = x.dtype.itemsize
    out_bytes = jnp.dtype(out_dtype).itemsize
    align = _m_align(in_bytes)
    vmem_cap = _vmem_capacity_bytes()
    a_tm, a_tn, a_tk = _select_tiles(M, N, K, in_bytes, out_bytes, align, vmem_cap)
    tm = a_tm if tm is None else tm
    tn = a_tn if tn is None else tn
    tk = a_tk if tk is None else tk
    assert tm % align == 0 and tn % 128 == 0 and tk % 128 == 0

    # Zero padding is matmul-neutral; padded rows/cols sliced off at the end.
    Mp, Np, Kp = _round_up(M, tm), _round_up(N, tn), _round_up(K, tk)
    if (Mp, Kp) != (M, K):
        x = jnp.pad(x, ((0, Mp - M), (0, Kp - K)))
    if (Kp, Np) != (K, N):
        w_kn = jnp.pad(w_kn, ((0, Kp - K), (0, Np - N)))
    b2d = bias.astype(jnp.float32)
    if Np != N:
        b2d = jnp.pad(b2d, (0, Np - N))
    b2d = b2d.reshape(1, Np)

    out = _fc_pallas_call(x, w_kn, b2d, relu=relu, tm=tm, tn=tn, tk=tk,
                          out_dtype=out_dtype)
    if (Mp, Np) != (M, N):
        out = out[:M, :N]
    return out


def make_fc(weight, bias, *, relu=True, compute_dtype=jnp.bfloat16, tm_max=768):
    """Serving-style API: hoist all static-parameter work (transpose to (K, N),
    cast, pad to the tile grid) out of the per-call path; returns jitted apply(x).
    """
    weight = jnp.asarray(weight)
    bias = jnp.asarray(bias)
    N, K = weight.shape
    assert bias.shape == (N,)

    in_bytes = (jnp.dtype(compute_dtype).itemsize
                if compute_dtype is not None else 4)
    align = _m_align(in_bytes)
    vmem_cap = _vmem_capacity_bytes()
    tm_sel, tn, tk = _select_tiles(tm_max, N, K, in_bytes, 4, align, vmem_cap,
                                   split_n_for_small_m=False)
    tm_cap = min(tm_max, tm_sel)

    w_kn = weight.T
    if compute_dtype is not None:
        w_kn = w_kn.astype(compute_dtype)
    Np, Kp = _round_up(N, tn), _round_up(K, tk)
    if (Kp, Np) != (K, N):
        w_kn = jnp.pad(w_kn, ((0, Kp - K), (0, Np - N)))
    b2d = bias.astype(jnp.float32)
    if Np != N:
        b2d = jnp.pad(b2d, (0, Np - N))
    b2d = b2d.reshape(1, Np)
    w_kn = jax.device_put(w_kn)          # prepared once, device-resident
    b2d = jax.device_put(b2d)

    @jax.jit
    def apply(x):
        M, Kx = x.shape
        assert Kx == K
        out_dtype = x.dtype
        xc = x.astype(compute_dtype) if compute_dtype is not None else x
        tm = min(_round_up(M, align), tm_cap)
        Mp = _round_up(M, tm)
        if (Mp, Kp) != (M, K):
            xc = jnp.pad(xc, ((0, Mp - M), (0, Kp - K)))
        out = _fc_pallas_call(xc, w_kn, b2d, relu=relu, tm=tm, tn=tn, tk=tk,
                              out_dtype=out_dtype)
        if (Mp, Np) != (M, N):
            out = out[:M, :N]
        return out

    return apply


if __name__ == "__main__":
    key = jax.random.PRNGKey(0)
    batch, in_features, out_features = 32, 256, 192

    kx, kw, kb = jax.random.split(key, 3)
    x = jax.random.normal(kx, (batch, in_features), dtype=jnp.float32)
    # Deterministic init mimicking nn.Linear's uniform(-1/sqrt(in), 1/sqrt(in)).
    bound = 1.0 / math.sqrt(in_features)
    weight = jax.random.uniform(
        kw, (out_features, in_features), minval=-bound, maxval=bound,
        dtype=jnp.float32)
    bias = jax.random.uniform(
        kb, (out_features,), minval=-bound, maxval=bound, dtype=jnp.float32)

    # References: full-f32 and bf16-cast-operand (matches the default path).
    ref_f32 = jnp.maximum(
        jnp.dot(x, weight.T, precision=lax.Precision.HIGHEST) + bias, 0.0)
    xb = x.astype(jnp.bfloat16).astype(jnp.float32)
    wb = weight.astype(jnp.bfloat16).astype(jnp.float32)
    ref_bf16 = jnp.maximum(
        jnp.dot(xb, wb.T, precision=lax.Precision.HIGHEST) + bias, 0.0)

    # 1) Default path: bf16 operands, fp32 accumulation, auto (big) tiles.
    y = jax.block_until_ready(fc_forward(x, weight, bias, relu=True))
    assert y.shape == (batch, out_features) and y.dtype == x.dtype
    assert jnp.allclose(y, ref_bf16, atol=2e-3, rtol=2e-3)
    assert jnp.allclose(y, ref_f32, atol=5e-2, rtol=5e-2)

    # 2) Hoisted-parameter path (weight transposed/cast/padded once).
    fc_apply = make_fc(weight, bias, relu=True)
    y2 = jax.block_until_ready(fc_apply(x))
    assert jnp.allclose(y2, ref_bf16, atol=2e-3, rtol=2e-3)

    # 3) Explicit small tiles: exercises the multi-step (i, j, k) grid + padding.
    y3 = jax.block_until_ready(
        fc_forward(x, weight, bias, relu=True, tm=16, tn=128, tk=128))
    assert jnp.allclose(y3, ref_bf16, atol=2e-3, rtol=2e-3)

    # 4) Full-f32 path, relu=False (plain nn.Linear).
    y4 = jax.block_until_ready(
        fc_forward(x, weight, bias, relu=False, compute_dtype=None))
    ref4 = jnp.dot(x, weight.T, precision=lax.Precision.HIGHEST) + bias
    assert jnp.allclose(y4, ref4, atol=2e-5, rtol=2e-5)

    print("KERNEL_OK")
</pallas_src>

<mosaic_0001>
module attributes {stable_mosaic.version = 11 : i64} {
  func.func @_fc_kernel(%arg0: i32, %arg1: i32, %arg2: i32, %arg3: memref<32x256xbf16, #tpu.memory_space<vmem>>, %arg4: memref<256x128xbf16, #tpu.memory_space<vmem>>, %arg5: memref<1x128xf32, #tpu.memory_space<vmem>>, %arg6: memref<32x128xf32, #tpu.memory_space<vmem>>, %arg7: memref<32x128xf32, #tpu.memory_space<vmem>>) attributes {dimension_semantics = [#tpu.dimension_semantics<parallel>, #tpu.dimension_semantics<parallel>, #tpu.dimension_semantics<arbitrary>], iteration_bounds = array<i64: 1, 2, 1>, scalar_prefetch = 0 : i64, scratch_operands = 1 : i64, tpu.core_type = #tpu.core_type<tc>, window_params = [{transform_indices = @transform_0, window_bounds = array<i64: 32, 256>}, {transform_indices = @transform_1, window_bounds = array<i64: 256, 128>}, {transform_indices = @transform_2, window_bounds = array<i64: 1, 128>}, {transform_indices = @transform_3, window_bounds = array<i64: 32, 128>}]} {
    %c0_i32 = arith.constant 0 : i32
    %0 = arith.cmpi eq, %arg2, %c0_i32 : i32
    %1 = arith.extui %0 : i1 to i32
    %c0_i32_0 = arith.constant 0 : i32
    %2 = arith.cmpi ne, %1, %c0_i32_0 : i32
    scf.if %2 {
      %c0_10 = arith.constant 0 : index
      %c0_11 = arith.constant 0 : index
      %12 = vector.load %arg5[%c0_10, %c0_11] : memref<1x128xf32, #tpu.memory_space<vmem>>, vector<1x128xf32>
      %13 = vector.shape_cast %12 : vector<1x128xf32> to vector<1x128xf32>
      %14 = vector.broadcast %13 : vector<1x128xf32> to vector<32x128xf32>
      %c0_12 = arith.constant 0 : index
      %c0_13 = arith.constant 0 : index
      %15 = vector.load %arg7[%c0_12, %c0_13] : memref<32x128xf32, #tpu.memory_space<vmem>>, vector<32x128xf32>
      tpu.vector_store %arg7[%c0_12, %c0_13], %14 {strides = array<i32>} : memref<32x128xf32, #tpu.memory_space<vmem>>, vector<32x128xf32>,
    } else {
    }
    %c0 = arith.constant 0 : index
    %c0_1 = arith.constant 0 : index
    %3 = vector.load %arg7[%c0, %c0_1] : memref<32x128xf32, #tpu.memory_space<vmem>>, vector<32x128xf32>
    %c0_2 = arith.constant 0 : index
    %c0_3 = arith.constant 0 : index
    %4 = vector.load %arg3[%c0_2, %c0_3] : memref<32x256xbf16, #tpu.memory_space<vmem>>, vector<32x256xbf16>
    %c0_4 = arith.constant 0 : index
    %c0_5 = arith.constant 0 : index
    %5 = vector.load %arg4[%c0_4, %c0_5] : memref<256x128xbf16, #tpu.memory_space<vmem>>, vector<256x128xbf16>
    %cst = arith.constant dense<0.000000e+00> : vector<32x128xf32>
    %6 = tpu.matmul %4, %5, %cst {dimension_numbers = #tpu.dot_dimension_numbers<[1], [0], [0], [1], [0, 0, 1, 1], [], []>} : vector<32x256xbf16>, vector<256x128xbf16>, vector<32x128xf32> -> vector<32x128xf32>
    %7 = arith.addf %3, %6 : vector<32x128xf32>
    %c0_6 = arith.constant 0 : index
    %c0_7 = arith.constant 0 : index
    %8 = vector.load %arg7[%c0_6, %c0_7] : memref<32x128xf32, #tpu.memory_space<vmem>>, vector<32x128xf32>
    tpu.vector_store %arg7[%c0_6, %c0_7], %7 {strides = array<i32>} : memref<32x128xf32, #tpu.memory_space<vmem>>, vector<32x128xf32>,
    %c0_i32_8 = arith.constant 0 : i32
    %9 = arith.cmpi eq, %arg2, %c0_i32_8 : i32
    %10 = arith.extui %9 : i1 to i32
    %c0_i32_9 = arith.constant 0 : i32
    %11 = arith.cmpi ne, %10, %c0_i32_9 : i32
    scf.if %11 {
      %c0_10 = arith.constant 0 : index
      %c0_11 = arith.constant 0 : index
      %12 = vector.load %arg7[%c0_10, %c0_11] : memref<32x128xf32, #tpu.memory_space<vmem>>, vector<32x128xf32>
      %cst_12 = arith.constant 0.000000e+00 : f32
      %13 = vector.broadcast %cst_12 : f32 to vector<32x128xf32>
      %14 = arith.maximumf %12, %13 : vector<32x128xf32>
      %c0_13 = arith.constant 0 : index
      %c0_14 = arith.constant 0 : index
      %15 = vector.load %arg6[%c0_13, %c0_14] : memref<32x128xf32, #tpu.memory_space<vmem>>, vector<32x128xf32>
      tpu.vector_store %arg6[%c0_13, %c0_14], %14 {strides = array<i32>} : memref<32x128xf32, #tpu.memory_space<vmem>>, vector<32x128xf32>,
    } else {
    }
    return
  }
  func.func @transform_0(%arg0: i32, %arg1: i32, %arg2: i32) -> (i32, i32) {
    %c0_i32 = arith.constant 0 : i32
    return %arg0, %arg2 : i32, i32
  }
  func.func @transform_1(%arg0: i32, %arg1: i32, %arg2: i32) -> (i32, i32) {
    %c0_i32 = arith.constant 0 : i32
    return %arg2, %arg1 : i32, i32
  }
  func.func @transform_2(%arg0: i32, %arg1: i32, %arg2: i32) -> (i32, i32) {
    %c0_i32 = arith.constant 0 : i32
    %c0_i32_0 = arith.constant 0 : i32
    return %c0_i32, %arg1 : i32, i32
  }
  func.func @transform_3(%arg0: i32, %arg1: i32, %arg2: i32) -> (i32, i32) {
    %c0_i32 = arith.constant 0 : i32
    return %arg0, %arg1 : i32, i32
  }
}

</mosaic_0001>

<llo_original>
// kernel: tpu_custom_call.1
$region0: #{tpu_custom_call.1}
  #allocation0 [shape = 'u32[]', space=smem, size = 0x4, offset = 0x4, fixed_abs, tag = 'smem constant byte address 0x4 - core index']
  #allocation1 [shape = 'u32[72,128]{1,0:T(1,128)}', space=vmem, size = 0x9000, scoped, tag = 'internal scratch']
  #allocation2 [shape = 'f32[32,128]{1,0:T(8,128)}', space=vmem, size = 0x4000, scoped, tag = 'scratch operand']
  %s0 = inlined_call_operand.hbm [shape: bf16[32,256], index: 0, kind: input, shape index: {}]
  %s1 = inlined_call_operand.hbm [shape: bf16[256,256], index: 1, kind: input, shape index: {}]
  %s2 = inlined_call_operand.hbm [shape: f32[1,256], index: 2, kind: input, shape index: {}]
  %s3 = inlined_call_operand.hbm [shape: f32[32,256], index: 3, kind: output, shape index: {}]
  %s4 = sld [smem:[#allocation0]]
  $region65: #{tpu_custom_call.1} parent=0
    _
  %s6 = ssub.s32 1, %s4
  %s7 = scalar_select 0, %s6, %s4
  $region1: #{tpu_custom_call.1} parent=0
    #allocation3 [shape = 'u8[16384]{0}', space=vmem, size = 0x4000, scoped, tag = 'input window, operand 0, single buffered']
    #allocation4 [shape = 's32[2]{0}', space=sflag, size = 0x8, scoped, tag = 'scoped memory for tpu_custom_call.1']
    #allocation5 [shape = 's32[2]{0}', space=sflag, size = 0x8, scoped, tag = 'scoped memory for tpu_custom_call.1']
    #allocation6 [shape = 'u8[131072]{0}', space=vmem, size = 0x20000, scoped, tag = 'input window, operand 1']
    #allocation7 [shape = 's32[2]{0}', space=sflag, size = 0x8, scoped, tag = 'scoped memory for tpu_custom_call.1']
    #allocation8 [shape = 'u8[1024]{0}', space=vmem, size = 0x400, scoped, tag = 'input window, operand 2']
    #allocation9 [shape = 'u8[32768]{0}', space=vmem, size = 0x8000, scoped, tag = 'output window, operand 0']
    %8 = vsyncpa [#allocation4], 0
    %9 = vsyncpa [#allocation7], 0
    %s10 = scalar_lea.sflag [#allocation7], 1
    %11 = vsyncpa %s10, 0
    %12 = vsyncpa [#allocation5], 0
    %s13 = scalar_lea.sflag [#allocation5], 1
    %14 = vsyncpa %s13, 0
    loop: start=0, step=1, limit=4
    $region2: #{tpu_custom_call.1} parent=1 // loop_pre_header
      _
    $region3: #{tpu_custom_call.1} parent=1 // loop_header
      %s16 = sphi 0, %s20
      %p17 = scmp.ge.s32.totalorder %s16, 4
      %s23 = sphi 0, %s42
      %s24 = sphi 0, %s38
      %s25 = sphi 0, %s34
      %s26 = sphi 0, %s23
      %s27 = sphi 0, %s24
      %s28 = sphi 0, %s25
      %s29 = sphi 0, %s26
      %s30 = sphi 0, %s27
      %s31 = sphi 0, %s28
      %s47 = sphi 0, %s49
      %s50 = sphi 0, %s47
      %s51 = sphi 0, %s50
      %s67 = sphi 0, %s51
      %s75 = sphi 0, %s77
      %s78 = sphi 0, %s75
      %s79 = sphi 0, %s78
      %s95 = sphi 0, %s79
      %s101 = sphi 0, %s103
      %s104 = sphi 0, %s101
      %s105 = sphi 0, %s104
      %s121 = sphi 0, %s105
      %s129 = sphi 0, %s131
      %s132 = sphi 0, %s129
      %s133 = sphi 0, %s132
      %s149 = sphi 0, %s133
    $region4: #{tpu_custom_call.1} parent=1 // loop_header_branch
      %19 = sbr.rel (%p17) target = $region8
    $region5: #{tpu_custom_call.1} parent=1 // loop_body
      %s21 = ssub.s32 %s16, 1
      %s22 = ssub.s32 %s16, 2
      %s32 = sadd.s32 1, %s25
      %p33 = scmp.ge.s32.totalorder %s32, 1
      %s34 = scalar_select %p33, 0, %s32
      %s35 = sadd.s32 1, %s24
      %s36 = scalar_select %p33, %s35, %s24
      %p37 = scmp.ge.s32.totalorder %s36, 2
      %s38 = scalar_select %p37, 0, %s36
      %s39 = sadd.s32 1, %s23
      %s40 = scalar_select %p37, %s39, %s23
      %p41 = scmp.ge.s32.totalorder %s40, 1
      %s42 = scalar_select %p41, 0, %s40
      %s43 = ssub.s32 %s23, %s42
      %s44 = ssub.s32 %s25, %s34
      %s45 = sor.u32 %s43, %s44
      %p46 = scmp.eq.s32.totalorder %s45, 0
      %s48 = sadd.s32 %s47, 1
      %s49 = scalar_select %p46, %s47, %s48
      %p52 = pneg %p46
      %p53 = scmp.eq.s32.totalorder %s16, 1
      %p54 = por %p52, %p53
      %p55 = scmp.ne.s32.totalorder %s47, %s50
      %p56 = scmp.eq.s32.totalorder %s16, 0
      %p57 = por %p55, %p56
      %p58 = scmp.ne.s32.totalorder %s47, %s50
      %p59 = scmp.eq.s32.totalorder %s21, 1
      %p60 = por %p58, %p59
      %p61 = scmp.ne.s32.totalorder %s50, %s51
      %p62 = scmp.eq.s32.totalorder %s21, 0
      %p63 = por %p61, %p62
      %p64 = scmp.ne.s32.totalorder %s50, %s51
      %p65 = scmp.eq.s32.totalorder %s22, 1
      %p66 = por %p64, %p65
      %p68 = scmp.ne.s32.totalorder %s51, %s67
      %p69 = scmp.eq.s32.totalorder %s22, 0
      %p70 = por %p68, %p69
      %s71 = ssub.s32 %s25, %s34
      %s72 = ssub.s32 %s24, %s38
      %s73 = sor.u32 %s71, %s72
      %p74 = scmp.eq.s32.totalorder %s73, 0
      %s76 = sadd.s32 %s75, 1
      %s77 = scalar_select %p74, %s75, %s76
      %p80 = pneg %p74
      %p81 = scmp.eq.s32.totalorder %s16, 1
      %p82 = por %p80, %p81
      %p83 = scmp.ne.s32.totalorder %s75, %s78
      %p84 = scmp.eq.s32.totalorder %s16, 0
      %p85 = por %p83, %p84
      %p86 = scmp.ne.s32.totalorder %s75, %s78
      %p87 = scmp.eq.s32.totalorder %s21, 1
      %p88 = por %p86, %p87
      %p89 = scmp.ne.s32.totalorder %s78, %s79
      %p90 = scmp.eq.s32.totalorder %s21, 0
      %p91 = por %p89, %p90
      %p92 = scmp.ne.s32.totalorder %s78, %s79
      %p93 = scmp.eq.s32.totalorder %s22, 1
      %p94 = por %p92, %p93
      %p96 = scmp.ne.s32.totalorder %s79, %s95
      %p97 = scmp.eq.s32.totalorder %s22, 0
      %p98 = por %p96, %p97
      %s99 = ssub.s32 %s24, %s38
      %p100 = scmp.eq.s32.totalorder %s99, 0
      %s102 = sadd.s32 %s101, 1
      %s103 = scalar_select %p100, %s101, %s102
      %p106 = pneg %p100
      %p107 = scmp.eq.s32.totalorder %s16, 1
      %p108 = por %p106, %p107
      %p109 = scmp.ne.s32.totalorder %s101, %s104
      %p110 = scmp.eq.s32.totalorder %s16, 0
      %p111 = por %p109, %p110
      %p112 = scmp.ne.s32.totalorder %s101, %s104
      %p113 = scmp.eq.s32.totalorder %s21, 1
      %p114 = por %p112, %p113
      %p115 = scmp.ne.s32.totalorder %s104, %s105
      %p116 = scmp.eq.s32.totalorder %s21, 0
      %p117 = por %p115, %p116
      %p118 = scmp.ne.s32.totalorder %s104, %s105
      %p119 = scmp.eq.s32.totalorder %s22, 1
      %p120 = por %p118, %p119
      %p122 = scmp.ne.s32.totalorder %s105, %s121
      %p123 = scmp.eq.s32.totalorder %s22, 0
      %p124 = por %p122, %p123
      %s125 = ssub.s32 %s23, %s42
      %s126 = ssub.s32 %s24, %s38
      %s127 = sor.u32 %s125, %s126
      %p128 = scmp.eq.s32.totalorder %s127, 0
      %s130 = sadd.s32 %s129, 1
      %s131 = scalar_select %p128, %s129, %s130
      %p134 = pneg %p128
      %p135 = scmp.eq.s32.totalorder %s16, 1
      %p136 = por %p134, %p135
      %p137 = scmp.ne.s32.totalorder %s129, %s132
      %p138 = scmp.eq.s32.totalorder %s16, 0
      %p139 = por %p137, %p138
      %p140 = scmp.ne.s32.totalorder %s129, %s132
      %p141 = scmp.eq.s32.totalorder %s21, 1
      %p142 = por %p140, %p141
      %p143 = scmp.ne.s32.totalorder %s132, %s133
      %p144 = scmp.eq.s32.totalorder %s21, 0
      %p145 = por %p143, %p144
      %p146 = scmp.ne.s32.totalorder %s132, %s133
      %p147 = scmp.eq.s32.totalorder %s22, 1
      %p148 = por %p146, %p147
      %p150 = scmp.ne.s32.totalorder %s133, %s149
      %p151 = scmp.eq.s32.totalorder %s22, 0
      %p152 = por %p150, %p151
      %p153 = scmp.le.s32.totalorder 1, %s16
      %p154 = scmp.lt.s32.totalorder %s16, 3
      %p155 = pnand %p153, %p154
      %p156 = pneg %p155
      // Predicated region
      $region9: #{tpu_custom_call.1} parent=5 // pred_check
        _
      $region10: #{tpu_custom_call.1} parent=5 // pred_check_branch
        %158 = sbr.rel (%p155) target = $region12
      $region11: #{tpu_custom_call.1} parent=5 // pred_region
        %s159 = ssub.s32 %s16, 1
        // Predicated region
        $region13: #{tpu_custom_call.1} parent=11 // pred_check
          %p160 = pneg %p63
        $region14: #{tpu_custom_call.1} parent=11 // pred_check_branch
          %162 = sbr.rel (%p160) target = $region16
        $region15: #{tpu_custom_call.1} parent=11 // pred_region
          %s163 = smul.u32 4, %s26
          %s164 = smul.u32 2, %s28
          %166 = vsyncadd [#allocation4], 0
          %s167 = smul.addr %s163, 2
          %s168 = sadd.s32 %s164, %s167
          %s169 = smul.addr %s168, 4
          %s170 = scalar_lea.hbm %s0, %s169
          %s171 = sshll.u32 %s170, 4
          %s172 = int_to_ptr.hbm [resolvable:$true] %s171
          %s173 = sshll.u32 [#allocation3], 4
          %s174 = int_to_ptr.vmem [resolvable:$true] %s173
          %179 = dma.hbm_to_vmem [thread:$0]  %s172, 512, %s174, [#allocation4], 128, 128, 8
        $region16: #{tpu_custom_call.1} parent=11 // pred_fallthru
          _
      $region12: #{tpu_custom_call.1} parent=5 // pred_fallthru
        _
      %p180 = scmp.lt.s32.totalorder %s16, 2
      // Predicated region
      $region17: #{tpu_custom_call.1} parent=5 // pred_check
        %p181 = pneg %p180
      $region18: #{tpu_custom_call.1} parent=5 // pred_check_branch
        %183 = sbr.rel (%p181) target = $region20
      $region19: #{tpu_custom_call.1} parent=5 // pred_region
        // Predicated region
        $region21: #{tpu_custom_call.1} parent=19 // pred_check
          %p184 = pneg %p85
        $region22: #{tpu_custom_call.1} parent=19 // pred_check_branch
          %186 = sbr.rel (%p184) target = $region24
        $region23: #{tpu_custom_call.1} parent=19 // pred_region
          %s187 = sand.u32 %s16, 1
          %s188 = scalar_lea.sflag [#allocation7], %s187
          %s189 = sand.u32 %s75, 1
          %s190 = smul.addr %s189, 128
          %s191 = scalar_lea.vmem [#allocation6], %s190
          %s192 = smul.u32 32, %s25
          %194 = vsyncadd %s188, 0
          %s195 = smul.addr %s192, 2
          %s196 = sadd.s32 %s24, %s195
          %s197 = smul.addr %s196, 4
          %s198 = scalar_lea.hbm %s1, %s197
          %s199 = sshll.u32 %s198, 4
          %s200 = int_to_ptr.hbm [resolvable:$true] %s199
          %s201 = sshll.u32 %s191, 4
          %s202 = int_to_ptr.vmem [resolvable:$true] %s201
          %207 = dma.hbm_to_vmem [thread:$0]  %s200, 2048, %s202, %s188, 128, 64, 4
        $region24: #{tpu_custom_call.1} parent=19 // pred_fallthru
          _
        // Predicated region
        $region25: #{tpu_custom_call.1} parent=19 // pred_check
          %p208 = pneg %p111
        $region26: #{tpu_custom_call.1} parent=19 // pred_check_branch
          %210 = sbr.rel (%p208) target = $region28
        $region27: #{tpu_custom_call.1} parent=19 // pred_region
          %s211 = sand.u32 %s16, 1
          %s212 = scalar_lea.sflag [#allocation7], %s211
          %s213 = sand.u32 %s101, 1
          %s214 = scalar_lea.vmem [#allocation8], %s213
          %216 = vsyncadd %s212, 0
          %s217 = scalar_lea.hbm %s2, %s24
          %s219 = sshll.u32 %s217, 4
          %s220 = int_to_ptr.hbm [resolvable:$true] %s219
          %s221 = sshll.u32 %s214, 4
          %s222 = int_to_ptr.vmem [resolvable:$true] %s221
          %224 = dma.hbm_to_vmem [thread:$0]  %s220, 16, %s222, %s212
        $region28: #{tpu_custom_call.1} parent=19 // pred_fallthru
          _
      $region20: #{tpu_custom_call.1} parent=5 // pred_fallthru
        _
      %p225 = scmp.le.s32.totalorder 1, %s16
      %p226 = scmp.lt.s32.totalorder %s16, 3
      %p227 = pnand %p225, %p226
      %p228 = pneg %p227
      // Predicated region
      $region29: #{tpu_custom_call.1} parent=5 // pred_check
        _
      $region30: #{tpu_custom_call.1} parent=5 // pred_check_branch
        %230 = sbr.rel (%p227) target = $region32
      $region31: #{tpu_custom_call.1} parent=5 // pred_region
        %s231 = ssub.s32 %s16, 1
        // Predicated region
        $region33: #{tpu_custom_call.1} parent=31 // pred_check
          %p232 = pneg %p63
        $region34: #{tpu_custom_call.1} parent=31 // pred_check_branch
          %234 = sbr.rel (%p232) target = $region36
        $region35: #{tpu_custom_call.1} parent=31 // pred_region
          %236 = dma.done [#allocation4], 512
        $region36: #{tpu_custom_call.1} parent=31 // pred_fallthru
          _
        %s237 = sand.u32 %s21, 1
        %s238 = scalar_lea.sflag [#allocation7], %s237
        %s239 = sand.u32 %s78, 1
        %s240 = smul.addr %s239, 128
        %s241 = scalar_lea.vmem [#allocation6], %s240
        // Predicated region
        $region37: #{tpu_custom_call.1} parent=31 // pred_check
          %p242 = pneg %p91
        $region38: #{tpu_custom_call.1} parent=31 // pred_check_branch
          %244 = sbr.rel (%p242) target = $region40
        $region39: #{tpu_custom_call.1} parent=31 // pred_region
          %246 = dma.done %s238, 2048
        $region40: #{tpu_custom_call.1} parent=31 // pred_fallthru
          _
        %s247 = sand.u32 %s21, 1
        %s248 = scalar_lea.sflag [#allocation7], %s247
        %s249 = sand.u32 %s104, 1
        %s250 = scalar_lea.vmem [#allocation8], %s249
        // Predicated region
        $region41: #{tpu_custom_call.1} parent=31 // pred_check
          %p251 = pneg %p117
        $region42: #{tpu_custom_call.1} parent=31 // pred_check_branch
          %253 = sbr.rel (%p251) target = $region44
        $region43: #{tpu_custom_call.1} parent=31 // pred_region
          %255 = dma.done %s248, 16
        $region44: #{tpu_custom_call.1} parent=31 // pred_fallthru
          _
        %p256 = pneg %p63
        %p257 = pneg %p60
        %s258 = sand.u32 %s21, 1
        %s259 = scalar_lea.sflag [#allocation7], %s258
        %s260 = sand.u32 %s78, 1
        %s261 = smul.addr %s260, 128
        %s262 = scalar_lea.vmem [#allocation6], %s261
        %p263 = pneg %p91
        %p264 = pneg %p88
        %s265 = sand.u32 %s21, 1
        %s266 = scalar_lea.sflag [#allocation7], %s265
        %s267 = sand.u32 %s104, 1
        %s268 = scalar_lea.vmem [#allocation8], %s267
        %p269 = pneg %p117
        %p270 = pneg %p114
        %p271 = pneg %p145
        %p272 = pneg %p142
        %s273 = sand.u32 %s132, 1
        %s274 = scalar_lea.sflag [#allocation5], %s273
        %s275 = sand.u32 %s132, 1
        %s276 = smul.addr %s275, 32
        %s277 = scalar_lea.vmem [#allocation9], %s276
        %s278 = smul.u32 4, %s26
        %s279 = smul.u32 2, %s28
        %s280 = smul.u32 32, %s28
        %s281 = smul.u32 4, %s26
        %p282 = scmp.eq.s32.totalorder %s28, 0
        // Predicated region
        $region45: #{tpu_custom_call.1} parent=31 // pred_check
          %p283 = pneg %p282
        $region46: #{tpu_custom_call.1} parent=31 // pred_check_branch
          %285 = sbr.rel (%p283) target = $region48
        $region47: #{tpu_custom_call.1} parent=31 // pred_region
          %v286 = vld [vmem:[%s250] sm:$0x1]
          %v288 = vperm.slane %v286, 0
          %290 = vst [vmem:[#allocation2] sm:$0xff] %v288
          %291 = vst [vmem:[#allocation2 + $0x8] sm:$0xff] %v288
          %292 = vst [vmem:[#allocation2 + $0x10] sm:$0xff] %v288
          %293 = vst [vmem:[#allocation2 + $0x18] sm:$0xff] %v288
        $region48: #{tpu_custom_call.1} parent=31 // pred_fallthru
          _
        %v294 = vld [vmem:[#allocation2] sm:$0xff]
        %v295 = vld [vmem:[#allocation2 + $0x8] sm:$0xff]
        %v296 = vld [vmem:[#allocation2 + $0x10] sm:$0xff]
        %v297 = vld [vmem:[#allocation2 + $0x18] sm:$0xff]
        %v298 = vld [vmem:[#allocation3] sm:$0xff]
        %v299 = vld [vmem:[#allocation3 + $0x8] sm:$0xff]
        %v300 = vld [vmem:[#allocation3 + $0x10] sm:$0xff]
        %v301 = vld [vmem:[#allocation3 + $0x18] sm:$0xff]
        %v302 = vld [vmem:[%s241] sm:$0xf]
        %v303 = vld [vmem:[%s241 + $0x4] sm:$0xf]
        %v304 = vld [vmem:[%s241 + $0x8] sm:$0xf]
        %v305 = vld [vmem:[%s241 + $0xc] sm:$0xf]
        %v306 = vld [vmem:[%s241 + $0x10] sm:$0xf]
        %v307 = vld [vmem:[%s241 + $0x14] sm:$0xf]
        %v308 = vld [vmem:[%s241 + $0x18] sm:$0xf]
        %v309 = vld [vmem:[%s241 + $0x1c] sm:$0xf]
        %v310 = vld [vmem:[%s241 + $0x20] sm:$0xf]
        %v311 = vld [vmem:[%s241 + $0x24] sm:$0xf]
        %v312 = vld [vmem:[%s241 + $0x28] sm:$0xf]
        %v313 = vld [vmem:[%s241 + $0x2c] sm:$0xf]
        %v314 = vld [vmem:[%s241 + $0x30] sm:$0xf]
        %v315 = vld [vmem:[%s241 + $0x34] sm:$0xf]
        %v316 = vld [vmem:[%s241 + $0x38] sm:$0xf]
        %v317 = vld [vmem:[%s241 + $0x3c] sm:$0xf]
        %v318 = vld [vmem:[%s241 + $0x40] sm:$0xf]
        %v319 = vld [vmem:[%s241 + $0x44] sm:$0xf]
        %v320 = vld [vmem:[%s241 + $0x48] sm:$0xf]
        %v321 = vld [vmem:[%s241 + $0x4c] sm:$0xf]
        %v322 = vld [vmem:[%s241 + $0x50] sm:$0xf]
        %v323 = vld [vmem:[%s241 + $0x54] sm:$0xf]
        %v324 = vld [vmem:[%s241 + $0x58] sm:$0xf]
        %v325 = vld [vmem:[%s241 + $0x5c] sm:$0xf]
        %v326 = vld [vmem:[%s241 + $0x60] sm:$0xf]
        %v327 = vld [vmem:[%s241 + $0x64] sm:$0xf]
        %v328 = vld [vmem:[%s241 + $0x68] sm:$0xf]
        %v329 = vld [vmem:[%s241 + $0x6c] sm:$0xf]
        %v330 = vld [vmem:[%s241 + $0x70] sm:$0xf]
        %v331 = vld [vmem:[%s241 + $0x74] sm:$0xf]
        %v332 = vld [vmem:[%s241 + $0x78] sm:$0xf]
        %v333 = vld [vmem:[%s241 + $0x7c] sm:$0xf]
        %v338 = vunpack.c.l.b16 %v298
        %v339 = vunpack.c.h.b16 %v298
        %v340 = vunpack.c.l.b16 %v299
        %v341 = vunpack.c.h.b16 %v299
        %v342 = vunpack.c.l.b16 %v300
        %v343 = vunpack.c.h.b16 %v300
        %v344 = vunpack.c.l.b16 %v301
        %v345 = vunpack.c.h.b16 %v301
        %v346 = vpack.c.b16 %v340, %v338
        %v347 = vpack.c.b16 %v341, %v339
        %v348 = vpack.c.b16 %v344, %v342
        %v349 = vpack.c.b16 %v345, %v343
        %v386 = vunpack.c.l.b16 %v302
        %v387 = vunpack.c.l.b16 %v303
        %v388 = vunpack.c.l.b16 %v304
        %v389 = vunpack.c.l.b16 %v305
        %v390 = vunpack.c.l.b16 %v306
        %v391 = vunpack.c.l.b16 %v307
        %v392 = vunpack.c.l.b16 %v308
        %v393 = vunpack.c.l.b16 %v309
        %v394 = vunpack.c.l.b16 %v310
        %v395 = vunpack.c.l.b16 %v311
        %v396 = vunpack.c.l.b16 %v312
        %v397 = vunpack.c.l.b16 %v313
        %v398 = vunpack.c.l.b16 %v314
        %v399 = vunpack.c.l.b16 %v315
        %v400 = vunpack.c.l.b16 %v316
        %v401 = vunpack.c.l.b16 %v317
        %v402 = vunpack.c.l.b16 %v318
        %v403 = vunpack.c.l.b16 %v319
        %v404 = vunpack.c.l.b16 %v320
        %v405 = vunpack.c.l.b16 %v321
        %v406 = vunpack.c.l.b16 %v322
        %v407 = vunpack.c.l.b16 %v323
        %v408 = vunpack.c.l.b16 %v324
        %v409 = vunpack.c.l.b16 %v325
        %v410 = vunpack.c.l.b16 %v326
        %v411 = vunpack.c.l.b16 %v327
        %v412 = vunpack.c.l.b16 %v328
        %v413 = vunpack.c.l.b16 %v329
        %v414 = vunpack.c.l.b16 %v330
        %v415 = vunpack.c.l.b16 %v331
        %v416 = vunpack.c.l.b16 %v332
        %v417 = vunpack.c.l.b16 %v333
        %v418 = vpack.c.b16 %v387, %v386
        %v419 = vpack.c.b16 %v389, %v388
        %v420 = vpack.c.b16 %v391, %v390
        %v421 = vpack.c.b16 %v393, %v392
        %v422 = vpack.c.b16 %v395, %v394
        %v423 = vpack.c.b16 %v397, %v396
        %v424 = vpack.c.b16 %v399, %v398
        %v425 = vpack.c.b16 %v401, %v400
        %v426 = vpack.c.b16 %v403, %v402
        %v427 = vpack.c.b16 %v405, %v404
        %v428 = vpack.c.b16 %v407, %v406
        %v429 = vpack.c.b16 %v409, %v408
        %v430 = vpack.c.b16 %v411, %v410
        %v431 = vpack.c.b16 %v413, %v412
        %v432 = vpack.c.b16 %v415, %v414
        %v433 = vpack.c.b16 %v417, %v416
        %450 = vmatpush.bf16.msra.mxu0 %v425
        %451 = vmatpush.bf16.msra.mxu0 %v424
        %452 = vmatpush.bf16.msra.mxu0 %v423
        %453 = vmatpush.bf16.msra.mxu0 %v422
        %454 = vmatpush.bf16.msra.mxu0 %v421
        %455 = vmatpush.bf16.msra.mxu0 %v420
        %456 = vmatpush.bf16.msra.mxu0 %v419
        %457 = vmatpush.bf16.msra.mxu0 %v418
        %458 = vmatmul.bf16.gmra.mxu0 %v346
        %v459 = vpop.f32.mrf.mxu0
        %v460 = vadd.f32 0.0, %v459
        %v461 = vpop.f32.mrf.mxu0
        %v462 = vadd.f32 0.0, %v461
        %463 = vmatmul.bf16.gmra.mxu0 %v348
        %v464 = vpop.f32.mrf.mxu0
        %v465 = vadd.f32 0.0, %v464
        %v466 = vpop.f32.mrf.mxu0
        %v467 = vadd.f32 0.0, %v466
        %468 = vdwg.mxu0
        %469 = vmatpush.bf16.msra.mxu0 %v433
        %470 = vmatpush.bf16.msra.mxu0 %v432
        %471 = vmatpush.bf16.msra.mxu0 %v431
        %472 = vmatpush.bf16.msra.mxu0 %v430
        %473 = vmatpush.bf16.msra.mxu0 %v429
        %474 = vmatpush.bf16.msra.mxu0 %v428
        %475 = vmatpush.bf16.msra.mxu0 %v427
        %476 = vmatpush.bf16.msra.mxu0 %v426
        %477 = vmatmul.bf16.gmra.mxu0 %v347
        %v478 = vpop.f32.mrf.mxu0
        %v479 = vadd.f32 %v460, %v478
        %v480 = vpop.f32.mrf.mxu0
        %v481 = vadd.f32 %v462, %v480
        %482 = vmatmul.bf16.gmra.mxu0 %v349
        %v483 = vpop.f32.mrf.mxu0
        %v484 = vadd.f32 %v465, %v483
        %v485 = vpop.f32.mrf.mxu0
        %v486 = vadd.f32 %v467, %v485
        %487 = vdwg.mxu0
        %v488 = vadd.f32 %v294, %v479
        %v489 = vadd.f32 %v295, %v481
        %v490 = vadd.f32 %v296, %v484
        %v491 = vadd.f32 %v297, %v486
        %492 = vst [vmem:[#allocation2] sm:$0xff] %v488
        %493 = vst [vmem:[#allocation2 + $0x8] sm:$0xff] %v489
        %494 = vst [vmem:[#allocation2 + $0x10] sm:$0xff] %v490
        %495 = vst [vmem:[#allocation2 + $0x18] sm:$0xff] %v491
        // Predicated region
        $region49: #{tpu_custom_call.1} parent=31 // pred_check
          %p496 = pneg %p282
        $region50: #{tpu_custom_call.1} parent=31 // pred_check_branch
          %498 = sbr.rel (%p496) target = $region52
        $region51: #{tpu_custom_call.1} parent=31 // pred_region
          %v499 = vld [vmem:[#allocation2] sm:$0xff]
          %v500 = vld [vmem:[#allocation2 + $0x8] sm:$0xff]
          %v501 = vld [vmem:[#allocation2 + $0x10] sm:$0xff]
          %v502 = vld [vmem:[#allocation2 + $0x18] sm:$0xff]
          %v503 = vmax.f32 %v499, 0.0
          %v504 = vmax.f32 %v500, 0.0
          %v505 = vmax.f32 %v501, 0.0
          %v506 = vmax.f32 %v502, 0.0
          %507 = vst [vmem:[%s277] sm:$0xff] %v503
          %508 = vst [vmem:[%s277 + $0x8] sm:$0xff] %v504
          %509 = vst [vmem:[%s277 + $0x10] sm:$0xff] %v505
          %510 = vst [vmem:[%s277 + $0x18] sm:$0xff] %v506
        $region52: #{tpu_custom_call.1} parent=31 // pred_fallthru
          _
        %s511 = sand.u32 %s132, 1
        %s512 = scalar_lea.sflag [#allocation5], %s511
        %s513 = sand.u32 %s132, 1
        %s514 = smul.addr %s513, 32
        %s515 = scalar_lea.vmem [#allocation9], %s514
        // Predicated region
        $region53: #{tpu_custom_call.1} parent=31 // pred_check
          %p516 = pneg %p142
        $region54: #{tpu_custom_call.1} parent=31 // pred_check_branch
          %518 = sbr.rel (%p516) target = $region56
        $region55: #{tpu_custom_call.1} parent=31 // pred_region
          %s519 = smul.u32 4, %s26
          %521 = vsyncadd %s512, 0
          %s522 = smul.addr %s519, 2
          %s523 = sadd.s32 %s27, %s522
          %s524 = smul.addr %s523, 8
          %s525 = scalar_lea.hbm %s3, %s524
          %s526 = sshll.u32 %s515, 4
          %s527 = int_to_ptr.vmem [resolvable:$true] %s526
          %s528 = sshll.u32 %s525, 4
          %s529 = int_to_ptr.hbm [resolvable:$true] %s528
          %534 = dma.vmem_to_hbm [thread:$0]  %s527, 512, %s529, %s512, 128, 256, 8
        $region56: #{tpu_custom_call.1} parent=31 // pred_fallthru
          _
      $region32: #{tpu_custom_call.1} parent=5 // pred_fallthru
        _
      %p535 = scmp.le.s32.totalorder 2, %s16
      // Predicated region
      $region57: #{tpu_custom_call.1} parent=5 // pred_check
        %p536 = pneg %p535
      $region58: #{tpu_custom_call.1} parent=5 // pred_check_branch
        %538 = sbr.rel (%p536) target = $region60
      $region59: #{tpu_custom_call.1} parent=5 // pred_region
        %s539 = ssub.s32 %s16, 2
        // Predicated region
        $region61: #{tpu_custom_call.1} parent=59 // pred_check
          %p540 = pneg %p148
        $region62: #{tpu_custom_call.1} parent=59 // pred_check_branch
          %542 = sbr.rel (%p540) target = $region64
        $region63: #{tpu_custom_call.1} parent=59 // pred_region
          %s543 = sand.u32 %s133, 1
          %s544 = scalar_lea.sflag [#allocation5], %s543
          %s545 = sand.u32 %s133, 1
          %s546 = smul.addr %s545, 32
          %s547 = scalar_lea.vmem [#allocation9], %s546
          %549 = dma.done %s544, 512
        $region64: #{tpu_custom_call.1} parent=59 // pred_fallthru
          _
      $region60: #{tpu_custom_call.1} parent=5 // pred_fallthru
        _
    $region6: #{tpu_custom_call.1} parent=1 // loop_footer
      %s20 = sadd.s32 1, %s16
    $region7: #{tpu_custom_call.1} parent=1 // loop_footer_branch
      %15 = sbr.rel target = $region3
    $region8: #{tpu_custom_call.1} parent=1 // loop_exit
      _
    %550 = vsyncpa [#allocation4], 1
    %s551 = scalar_lea.sflag [#allocation4], 1
    %552 = vsyncpa %s551, 1
    %553 = vsyncpa [#allocation7], 1
    %s554 = scalar_lea.sflag [#allocation7], 1
    %555 = vsyncpa %s554, 1
    %556 = vsyncpa [#allocation5], 1
    %s557 = scalar_lea.sflag [#allocation5], 1
    %558 = vsyncpa %s557, 1

</llo_original>
